<compile_context>
chip_gen: v7x
topology: tpu7x:2x2x1
jax: 0.10.0
libtpu: 0.0.40
codegen_flags: <defaults>
</compile_context>

<pallas_src>
import functools

import jax
import jax.numpy as jnp
from jax.experimental import pallas as pl
from jax.experimental.pallas import tpu as pltpu


# ----------------------------- Pallas kernel ------------------------------ #
def _encoder_kernel(num_layers, T, H, len_ref, x_ref, *refs):
    """Fused multi-layer LSTM encoder, single grid step.

    refs layout:
      [wihT_0, whhT_0, bias_0, ..., wihT_{L-1}, whhT_{L-1}, bias_{L-1},
       h_out, c_out,                       # outputs (L, Bp, H)
       seq_sc, proj_sc, h_sc, c_sc]        # VMEM scratch
    x_ref is the time-major input flattened to (T*Bp, I): rows
    [t*Bp, (t+1)*Bp) hold timestep t.
    """
    w_refs = refs[:3 * num_layers]
    h_out = refs[3 * num_layers]
    c_out = refs[3 * num_layers + 1]
    seq_sc, proj_sc, h_sc, c_sc = refs[3 * num_layers + 2:]

    Bp = h_sc.shape[0]

    for layer in range(num_layers):
        wih_ref = w_refs[3 * layer]       # (in_l, 4H)
        whh_ref = w_refs[3 * layer + 1]   # (H,   4H)
        b_ref = w_refs[3 * layer + 2]     # (1,   4H)

        # ---- Hoisted input projection: ONE big (T*Bp, in) x (in, 4H) matmul --
        in_2d = x_ref[...] if layer == 0 else seq_sc[...]
        proj_sc[...] = (
            jnp.dot(in_2d, wih_ref[...], preferred_element_type=jnp.float32)
            + b_ref[...])

        # ---- Recurrence over time (in-kernel loop, state resident in VMEM) --
        h_sc[...] = jnp.zeros_like(h_sc)
        c_sc[...] = jnp.zeros_like(c_sc)

        write_seq = layer < num_layers - 1   # last layer's sequence is dead data

        @pl.loop(0, T)
        def _(t):
            row = pl.multiple_of(t * Bp, Bp)     # Bp is a multiple of 8 -> aligned
            h_prev = h_sc[...]
            c_prev = c_sc[...]

            # Single MXU op per step: the input contribution is precomputed.
            gates = proj_sc[pl.ds(row, Bp), :] + jnp.dot(
                h_prev, whh_ref[...], preferred_element_type=jnp.float32)

            # PyTorch gate order: input, forget, cell(g), output
            i_g = jax.nn.sigmoid(gates[:, 0 * H:1 * H])
            f_g = jax.nn.sigmoid(gates[:, 1 * H:2 * H])
            g_g = jnp.tanh(gates[:, 2 * H:3 * H])
            o_g = jax.nn.sigmoid(gates[:, 3 * H:4 * H])

            c_new = f_g * c_prev + i_g * g_g
            h_new = o_g * jnp.tanh(c_new)

            # Packed-sequence semantics: freeze state once t >= length[b].
            live = t < len_ref[...]                      # (Bp, 1) bool
            h_upd = jnp.where(live, h_new, h_prev)
            c_upd = jnp.where(live, c_new, c_prev)
            h_sc[...] = h_upd
            c_sc[...] = c_upd

            if write_seq:                                # next layer's input (VMEM only)
                seq_sc[pl.ds(row, Bp), :] = h_upd

        # Resident outputs written ONCE per layer (not per timestep).
        h_out[layer] = h_sc[...]
        c_out[layer] = c_sc[...]


# ------------------------------- Encoder ----------------------------------- #
def encoder_forward(params, to_predict, lengths_tensor):
    """params: list of (w_ih, w_hh, b_ih, b_hh) per layer (PyTorch layout).
    to_predict: (B, T, input_size) float32, lengths_tensor: (B,) int32.
    Returns (h_n, c_n) each (num_layers, B, hidden_size) float32."""
    x = jnp.asarray(to_predict, jnp.float32)
    B, T, I = x.shape
    L = len(params)
    H = params[0][1].shape[1]

    # Pad batch to a multiple of 8 (f32 sublane tile); padded rows get length 0
    # so their state stays zero and is sliced off at the end.
    Bp = ((B + 7) // 8) * 8
    lengths = jnp.asarray(lengths_tensor, jnp.int32)
    if Bp != B:
        x = jnp.pad(x, ((0, Bp - B), (0, 0), (0, 0)))
        lengths = jnp.pad(lengths, (0, Bp - B))
    len2d = lengths.reshape(Bp, 1)

    # time-major, flattened: rows [t*Bp, (t+1)*Bp) hold timestep t.
    x_tm = jnp.transpose(x, (1, 0, 2)).reshape(T * Bp, I)

    flat_w = []
    in_specs = [
        pl.BlockSpec((Bp, 1), lambda i: (0, 0)),        # lengths
        pl.BlockSpec((T * Bp, I), lambda i: (0, 0)),    # input (time-major, flat)
    ]
    for (w_ih, w_hh, b_ih, b_hh) in params:
        in_sz = w_ih.shape[1]
        wihT = jnp.asarray(w_ih, jnp.float32).T          # (in, 4H)
        whhT = jnp.asarray(w_hh, jnp.float32).T          # (H, 4H)
        bias = (jnp.asarray(b_ih, jnp.float32)
                + jnp.asarray(b_hh, jnp.float32)).reshape(1, 4 * H)
        flat_w += [wihT, whhT, bias]
        in_specs += [
            pl.BlockSpec((in_sz, 4 * H), lambda i: (0, 0)),
            pl.BlockSpec((H, 4 * H), lambda i: (0, 0)),
            pl.BlockSpec((1, 4 * H), lambda i: (0, 0)),
        ]

    grid_spec = pltpu.PrefetchScalarGridSpec(
        num_scalar_prefetch=0,
        grid=(1,),                         # everything runs in one kernel invocation
        in_specs=in_specs,
        out_specs=[
            pl.BlockSpec((L, Bp, H), lambda i: (0, 0, 0)),   # h_n
            pl.BlockSpec((L, Bp, H), lambda i: (0, 0, 0)),   # c_n
        ],
        scratch_shapes=[
            pltpu.VMEM((T * Bp, H), jnp.float32),       # inter-layer hidden sequence
            pltpu.VMEM((T * Bp, 4 * H), jnp.float32),   # hoisted input projection
            pltpu.VMEM((Bp, H), jnp.float32),           # h state
            pltpu.VMEM((Bp, H), jnp.float32),           # c state
        ],
    )

    kernel = functools.partial(_encoder_kernel, L, T, H)
    h_pad, c_pad = pl.pallas_call(
        kernel,
        grid_spec=grid_spec,
        out_shape=(
            jax.ShapeDtypeStruct((L, Bp, H), jnp.float32),
            jax.ShapeDtypeStruct((L, Bp, H), jnp.float32),
        ),
        compiler_params=pltpu.CompilerParams(
            dimension_semantics=("arbitrary",)),
    )(len2d, x_tm, *flat_w)

    return h_pad[:, :B, :], c_pad[:, :B, :]


# ------------------------- pure-JAX reference ------------------------------ #
def encoder_reference(params, to_predict, lengths_tensor):
    x = jnp.transpose(jnp.asarray(to_predict, jnp.float32), (1, 0, 2))
    T, B, _ = x.shape
    lengths = jnp.asarray(lengths_tensor, jnp.int32)
    hs, cs = [], []
    for (w_ih, w_hh, b_ih, b_hh) in params:
        H = w_hh.shape[1]
        h = jnp.zeros((B, H), jnp.float32)
        c = jnp.zeros((B, H), jnp.float32)
        outs = []
        for t in range(T):
            gates = x[t] @ w_ih.T + h @ w_hh.T + b_ih + b_hh
            i = jax.nn.sigmoid(gates[:, :H])
            f = jax.nn.sigmoid(gates[:, H:2 * H])
            g = jnp.tanh(gates[:, 2 * H:3 * H])
            o = jax.nn.sigmoid(gates[:, 3 * H:])
            c_new = f * c + i * g
            h_new = o * jnp.tanh(c_new)
            m = (t < lengths).astype(jnp.float32)[:, None]
            h = m * h_new + (1.0 - m) * h
            c = m * c_new + (1.0 - m) * c
            outs.append(h)
        x = jnp.stack(outs, axis=0)
        hs.append(h)
        cs.append(c)
    return jnp.stack(hs, 0), jnp.stack(cs, 0)


# --------------------------------- main ------------------------------------ #
def make_params(key, input_size, hidden_size, num_layers):
    params = []
    k = 1.0 / jnp.sqrt(hidden_size)
    for layer in range(num_layers):
        in_sz = input_size if layer == 0 else hidden_size
        key, k1, k2, k3, k4 = jax.random.split(key, 5)
        w_ih = jax.random.uniform(k1, (4 * hidden_size, in_sz), jnp.float32, -k, k)
        w_hh = jax.random.uniform(k2, (4 * hidden_size, hidden_size), jnp.float32, -k, k)
        b_ih = jax.random.uniform(k3, (4 * hidden_size,), jnp.float32, -k, k)
        b_hh = jax.random.uniform(k4, (4 * hidden_size,), jnp.float32, -k, k)
        params.append((w_ih, w_hh, b_ih, b_hh))
    return params


if __name__ == "__main__":
    B, T = 4, 8
    input_size, hidden_size, num_layers = 32, 32, 2

    key = jax.random.PRNGKey(0)
    key, kx = jax.random.split(key)
    to_predict = jax.random.normal(kx, (B, T, input_size), jnp.float32)
    # unsorted lengths (enforce_sorted=False semantics), each >= 1 and <= T
    lengths_tensor = jnp.array([8, 5, 3, 6], dtype=jnp.int32)

    params = make_params(key, input_size, hidden_size, num_layers)

    h_n, c_n = encoder_forward(params, to_predict, lengths_tensor)
    h_n = jax.block_until_ready(h_n)
    c_n = jax.block_until_ready(c_n)

    h_ref, c_ref = encoder_reference(params, to_predict, lengths_tensor)
    assert h_n.shape == (num_layers, B, hidden_size)
    assert c_n.shape == (num_layers, B, hidden_size)
    assert jnp.allclose(h_n, h_ref, atol=1e-5, rtol=1e-5)
    assert jnp.allclose(c_n, c_ref, atol=1e-5, rtol=1e-5)

    print("KERNEL_OK")
</pallas_src>

<mosaic_0001>
module attributes {stable_mosaic.version = 11 : i64} {
  func.func @_encoder_kernel(%arg0: i32, %arg1: memref<8x1xi32, #tpu.memory_space<vmem>>, %arg2: memref<64x32xf32, #tpu.memory_space<vmem>>, %arg3: memref<32x128xf32, #tpu.memory_space<vmem>>, %arg4: memref<32x128xf32, #tpu.memory_space<vmem>>, %arg5: memref<1x128xf32, #tpu.memory_space<vmem>>, %arg6: memref<32x128xf32, #tpu.memory_space<vmem>>, %arg7: memref<32x128xf32, #tpu.memory_space<vmem>>, %arg8: memref<1x128xf32, #tpu.memory_space<vmem>>, %arg9: memref<2x8x32xf32, #tpu.memory_space<vmem>>, %arg10: memref<2x8x32xf32, #tpu.memory_space<vmem>>, %arg11: memref<64x32xf32, #tpu.memory_space<vmem>>, %arg12: memref<64x128xf32, #tpu.memory_space<vmem>>, %arg13: memref<8x32xf32, #tpu.memory_space<vmem>>, %arg14: memref<8x32xf32, #tpu.memory_space<vmem>>) attributes {dimension_semantics = [#tpu.dimension_semantics<arbitrary>], iteration_bounds = array<i64: 1>, scalar_prefetch = 0 : i64, scratch_operands = 4 : i64, tpu.core_type = #tpu.core_type<tc>, window_params = [{pipeline_mode = #tpu.pipeline_mode<synchronous>, transform_indices = @transform_0, window_bounds = array<i64: 8, 1>}, {pipeline_mode = #tpu.pipeline_mode<synchronous>, transform_indices = @transform_1, window_bounds = array<i64: 64, 32>}, {pipeline_mode = #tpu.pipeline_mode<synchronous>, transform_indices = @transform_2, window_bounds = array<i64: 32, 128>}, {pipeline_mode = #tpu.pipeline_mode<synchronous>, transform_indices = @transform_3, window_bounds = array<i64: 32, 128>}, {pipeline_mode = #tpu.pipeline_mode<synchronous>, transform_indices = @transform_4, window_bounds = array<i64: 1, 128>}, {pipeline_mode = #tpu.pipeline_mode<synchronous>, transform_indices = @transform_5, window_bounds = array<i64: 32, 128>}, {pipeline_mode = #tpu.pipeline_mode<synchronous>, transform_indices = @transform_6, window_bounds = array<i64: 32, 128>}, {pipeline_mode = #tpu.pipeline_mode<synchronous>, transform_indices = @transform_7, window_bounds = array<i64: 1, 128>}, {pipeline_mode = #tpu.pipeline_mode<synchronous>, transform_indices = @transform_8, window_bounds = array<i64: 2, 8, 32>}, {pipeline_mode = #tpu.pipeline_mode<synchronous>, transform_indices = @transform_9, window_bounds = array<i64: 2, 8, 32>}]} {
    %c0 = arith.constant 0 : index
    %c0_0 = arith.constant 0 : index
    %0 = vector.load %arg2[%c0, %c0_0] : memref<64x32xf32, #tpu.memory_space<vmem>>, vector<64x32xf32>
    %c0_1 = arith.constant 0 : index
    %c0_2 = arith.constant 0 : index
    %1 = vector.load %arg3[%c0_1, %c0_2] : memref<32x128xf32, #tpu.memory_space<vmem>>, vector<32x128xf32>
    %cst = arith.constant dense<0.000000e+00> : vector<64x128xf32>
    %2 = tpu.matmul %0, %1, %cst {dimension_numbers = #tpu.dot_dimension_numbers<[1], [0], [0], [1], [0, 0, 1, 1], [], []>} : vector<64x32xf32>, vector<32x128xf32>, vector<64x128xf32> -> vector<64x128xf32>
    %c0_3 = arith.constant 0 : index
    %c0_4 = arith.constant 0 : index
    %3 = vector.load %arg5[%c0_3, %c0_4] : memref<1x128xf32, #tpu.memory_space<vmem>>, vector<1x128xf32>
    %4 = vector.broadcast %3 : vector<1x128xf32> to vector<64x128xf32>
    %5 = arith.addf %2, %4 : vector<64x128xf32>
    %c0_5 = arith.constant 0 : index
    %c0_6 = arith.constant 0 : index
    %6 = vector.load %arg12[%c0_5, %c0_6] : memref<64x128xf32, #tpu.memory_space<vmem>>, vector<64x128xf32>
    tpu.vector_store %arg12[%c0_5, %c0_6], %5 {strides = array<i32>} : memref<64x128xf32, #tpu.memory_space<vmem>>, vector<64x128xf32>,
    %cst_7 = arith.constant 0.000000e+00 : f32
    %7 = vector.broadcast %cst_7 : f32 to vector<8x32xf32>
    %c0_8 = arith.constant 0 : index
    %c0_9 = arith.constant 0 : index
    %8 = vector.load %arg13[%c0_8, %c0_9] : memref<8x32xf32, #tpu.memory_space<vmem>>, vector<8x32xf32>
    tpu.vector_store %arg13[%c0_8, %c0_9], %7 {strides = array<i32>} : memref<8x32xf32, #tpu.memory_space<vmem>>, vector<8x32xf32>,
    %cst_10 = arith.constant 0.000000e+00 : f32
    %9 = vector.broadcast %cst_10 : f32 to vector<8x32xf32>
    %c0_11 = arith.constant 0 : index
    %c0_12 = arith.constant 0 : index
    %10 = vector.load %arg14[%c0_11, %c0_12] : memref<8x32xf32, #tpu.memory_space<vmem>>, vector<8x32xf32>
    tpu.vector_store %arg14[%c0_11, %c0_12], %9 {strides = array<i32>} : memref<8x32xf32, #tpu.memory_space<vmem>>, vector<8x32xf32>,
    %c0_i32 = arith.constant 0 : i32
    %c8_i32 = arith.constant 8 : i32
    %11 = arith.addi %c0_i32, %c8_i32 : i32
    %c1_i32 = arith.constant 1 : i32
    scf.for %arg15 = %c0_i32 to %11 step %c1_i32  : i32 {
      %c1_i32_52 = arith.constant 1 : i32
      %40 = arith.muli %arg15, %c1_i32_52 : i32
      %c0_i32_53 = arith.constant 0 : i32
      %41 = arith.addi %c0_i32_53, %40 : i32
      %c8_i32_54 = arith.constant 8 : i32
      %42 = arith.muli %41, %c8_i32_54 : i32
      %43 = tpu.assume_multiple %42, 8 : i32
      %c0_55 = arith.constant 0 : index
      %c0_56 = arith.constant 0 : index
      %44 = vector.load %arg13[%c0_55, %c0_56] : memref<8x32xf32, #tpu.memory_space<vmem>>, vector<8x32xf32>
      %c0_57 = arith.constant 0 : index
      %c0_58 = arith.constant 0 : index
      %45 = vector.load %arg14[%c0_57, %c0_58] : memref<8x32xf32, #tpu.memory_space<vmem>>, vector<8x32xf32>
      %46 = arith.index_cast %43 : i32 to index
      %c0_59 = arith.constant 0 : index
      %47 = vector.load %arg12[%46, %c0_59] : memref<64x128xf32, #tpu.memory_space<vmem>>, vector<8x128xf32>
      %c0_60 = arith.constant 0 : index
      %c0_61 = arith.constant 0 : index
      %48 = vector.load %arg4[%c0_60, %c0_61] : memref<32x128xf32, #tpu.memory_space<vmem>>, vector<32x128xf32>
      %cst_62 = arith.constant dense<0.000000e+00> : vector<8x128xf32>
      %49 = tpu.matmul %44, %48, %cst_62 {dimension_numbers = #tpu.dot_dimension_numbers<[1], [0], [0], [1], [0, 0, 1, 1], [], []>} : vector<8x32xf32>, vector<32x128xf32>, vector<8x128xf32> -> vector<8x128xf32>
      %50 = arith.addf %47, %49 : vector<8x128xf32>
      %51 = vector.extract_strided_slice %50 {offsets = [0, 0], sizes = [8, 32], strides = [1, 1]} : vector<8x128xf32> to vector<8x32xf32>
      %52 = arith.negf %51 : vector<8x32xf32>
      %53 = math.exp %52 : vector<8x32xf32>
      %cst_63 = arith.constant 1.000000e+00 : f32
      %54 = vector.broadcast %cst_63 : f32 to vector<8x32xf32>
      %55 = arith.addf %54, %53 : vector<8x32xf32>
      %56 = arith.divf %54, %55 : vector<8x32xf32>
      %57 = vector.extract_strided_slice %50 {offsets = [0, 32], sizes = [8, 32], strides = [1, 1]} : vector<8x128xf32> to vector<8x32xf32>
      %58 = arith.negf %57 : vector<8x32xf32>
      %59 = math.exp %58 : vector<8x32xf32>
      %cst_64 = arith.constant 1.000000e+00 : f32
      %60 = vector.broadcast %cst_64 : f32 to vector<8x32xf32>
      %61 = arith.addf %60, %59 : vector<8x32xf32>
      %62 = arith.divf %60, %61 : vector<8x32xf32>
      %63 = vector.extract_strided_slice %50 {offsets = [0, 64], sizes = [8, 32], strides = [1, 1]} : vector<8x128xf32> to vector<8x32xf32>
      %64 = math.tanh %63 : vector<8x32xf32>
      %65 = vector.extract_strided_slice %50 {offsets = [0, 96], sizes = [8, 32], strides = [1, 1]} : vector<8x128xf32> to vector<8x32xf32>
      %66 = arith.negf %65 : vector<8x32xf32>
      %67 = math.exp %66 : vector<8x32xf32>
      %cst_65 = arith.constant 1.000000e+00 : f32
      %68 = vector.broadcast %cst_65 : f32 to vector<8x32xf32>
      %69 = arith.addf %68, %67 : vector<8x32xf32>
      %70 = arith.divf %68, %69 : vector<8x32xf32>
      %71 = arith.mulf %62, %45 : vector<8x32xf32>
      %72 = arith.mulf %56, %64 : vector<8x32xf32>
      %73 = arith.addf %71, %72 : vector<8x32xf32>
      %74 = math.tanh %73 : vector<8x32xf32>
      %75 = arith.mulf %70, %74 : vector<8x32xf32>
      %c0_66 = arith.constant 0 : index
      %c0_67 = arith.constant 0 : index
      %76 = vector.load %arg1[%c0_66, %c0_67] : memref<8x1xi32, #tpu.memory_space<vmem>>, vector<8x1xi32>
      %77 = vector.broadcast %41 : i32 to vector<8x1xi32>
      %78 = arith.cmpi slt, %77, %76 : vector<8x1xi32>
      %79 = vector.shape_cast %78 : vector<8x1xi1> to vector<8x1xi1>
      %80 = vector.broadcast %79 : vector<8x1xi1> to vector<8x32xi1>
      %81 = arith.select %80, %75, %44 : vector<8x32xi1>, vector<8x32xf32>
      %82 = vector.shape_cast %78 : vector<8x1xi1> to vector<8x1xi1>
      %83 = vector.broadcast %82 : vector<8x1xi1> to vector<8x32xi1>
      %84 = arith.select %83, %73, %45 : vector<8x32xi1>, vector<8x32xf32>
      %c0_68 = arith.constant 0 : index
      %c0_69 = arith.constant 0 : index
      %85 = vector.load %arg13[%c0_68, %c0_69] : memref<8x32xf32, #tpu.memory_space<vmem>>, vector<8x32xf32>
      tpu.vector_store %arg13[%c0_68, %c0_69], %81 {strides = array<i32>} : memref<8x32xf32, #tpu.memory_space<vmem>>, vector<8x32xf32>,
      %c0_70 = arith.constant 0 : index
      %c0_71 = arith.constant 0 : index
      %86 = vector.load %arg14[%c0_70, %c0_71] : memref<8x32xf32, #tpu.memory_space<vmem>>, vector<8x32xf32>
      tpu.vector_store %arg14[%c0_70, %c0_71], %84 {strides = array<i32>} : memref<8x32xf32, #tpu.memory_space<vmem>>, vector<8x32xf32>,
      %87 = arith.index_cast %43 : i32 to index
      %c0_72 = arith.constant 0 : index
      %88 = vector.load %arg11[%87, %c0_72] : memref<64x32xf32, #tpu.memory_space<vmem>>, vector<8x32xf32>
      tpu.vector_store %arg11[%87, %c0_72], %81 {strides = array<i32>} : memref<64x32xf32, #tpu.memory_space<vmem>>, vector<8x32xf32>,
    }
    %c8_i32_13 = arith.constant 8 : i32
    %c0_14 = arith.constant 0 : index
    %c0_15 = arith.constant 0 : index
    %12 = vector.load %arg13[%c0_14, %c0_15] : memref<8x32xf32, #tpu.memory_space<vmem>>, vector<8x32xf32>
    %c0_16 = arith.constant 0 : index
    %c0_17 = arith.constant 0 : index
    %c0_18 = arith.constant 0 : index
    %13 = vector.load %arg9[%c0_16, %c0_17, %c0_18] : memref<2x8x32xf32, #tpu.memory_space<vmem>>, vector<1x8x32xf32>
    %14 = vector.shape_cast %13 : vector<1x8x32xf32> to vector<8x32xf32>
    %15 = vector.shape_cast %12 : vector<8x32xf32> to vector<1x8x32xf32>
    tpu.vector_store %arg9[%c0_16, %c0_17, %c0_18], %15 {strides = array<i32>} : memref<2x8x32xf32, #tpu.memory_space<vmem>>, vector<1x8x32xf32>,
    %c0_19 = arith.constant 0 : index
    %c0_20 = arith.constant 0 : index
    %16 = vector.load %arg14[%c0_19, %c0_20] : memref<8x32xf32, #tpu.memory_space<vmem>>, vector<8x32xf32>
    %c0_21 = arith.constant 0 : index
    %c0_22 = arith.constant 0 : index
    %c0_23 = arith.constant 0 : index
    %17 = vector.load %arg10[%c0_21, %c0_22, %c0_23] : memref<2x8x32xf32, #tpu.memory_space<vmem>>, vector<1x8x32xf32>
    %18 = vector.shape_cast %17 : vector<1x8x32xf32> to vector<8x32xf32>
    %19 = vector.shape_cast %16 : vector<8x32xf32> to vector<1x8x32xf32>
    tpu.vector_store %arg10[%c0_21, %c0_22, %c0_23], %19 {strides = array<i32>} : memref<2x8x32xf32, #tpu.memory_space<vmem>>, vector<1x8x32xf32>,
    %c0_24 = arith.constant 0 : index
    %c0_25 = arith.constant 0 : index
    %20 = vector.load %arg11[%c0_24, %c0_25] : memref<64x32xf32, #tpu.memory_space<vmem>>, vector<64x32xf32>
    %c0_26 = arith.constant 0 : index
    %c0_27 = arith.constant 0 : index
    %21 = vector.load %arg6[%c0_26, %c0_27] : memref<32x128xf32, #tpu.memory_space<vmem>>, vector<32x128xf32>
    %cst_28 = arith.constant dense<0.000000e+00> : vector<64x128xf32>
    %22 = tpu.matmul %20, %21, %cst_28 {dimension_numbers = #tpu.dot_dimension_numbers<[1], [0], [0], [1], [0, 0, 1, 1], [], []>} : vector<64x32xf32>, vector<32x128xf32>, vector<64x128xf32> -> vector<64x128xf32>
    %c0_29 = arith.constant 0 : index
    %c0_30 = arith.constant 0 : index
    %23 = vector.load %arg8[%c0_29, %c0_30] : memref<1x128xf32, #tpu.memory_space<vmem>>, vector<1x128xf32>
    %24 = vector.broadcast %23 : vector<1x128xf32> to vector<64x128xf32>
    %25 = arith.addf %22, %24 : vector<64x128xf32>
    %c0_31 = arith.constant 0 : index
    %c0_32 = arith.constant 0 : index
    %26 = vector.load %arg12[%c0_31, %c0_32] : memref<64x128xf32, #tpu.memory_space<vmem>>, vector<64x128xf32>
    tpu.vector_store %arg12[%c0_31, %c0_32], %25 {strides = array<i32>} : memref<64x128xf32, #tpu.memory_space<vmem>>, vector<64x128xf32>,
    %cst_33 = arith.constant 0.000000e+00 : f32
    %27 = vector.broadcast %cst_33 : f32 to vector<8x32xf32>
    %c0_34 = arith.constant 0 : index
    %c0_35 = arith.constant 0 : index
    %28 = vector.load %arg13[%c0_34, %c0_35] : memref<8x32xf32, #tpu.memory_space<vmem>>, vector<8x32xf32>
    tpu.vector_store %arg13[%c0_34, %c0_35], %27 {strides = array<i32>} : memref<8x32xf32, #tpu.memory_space<vmem>>, vector<8x32xf32>,
    %cst_36 = arith.constant 0.000000e+00 : f32
    %29 = vector.broadcast %cst_36 : f32 to vector<8x32xf32>
    %c0_37 = arith.constant 0 : index
    %c0_38 = arith.constant 0 : index
    %30 = vector.load %arg14[%c0_37, %c0_38] : memref<8x32xf32, #tpu.memory_space<vmem>>, vector<8x32xf32>
    tpu.vector_store %arg14[%c0_37, %c0_38], %29 {strides = array<i32>} : memref<8x32xf32, #tpu.memory_space<vmem>>, vector<8x32xf32>,
    %c0_i32_39 = arith.constant 0 : i32
    %c8_i32_40 = arith.constant 8 : i32
    %31 = arith.addi %c0_i32_39, %c8_i32_40 : i32
    %c1_i32_41 = arith.constant 1 : i32
    scf.for %arg15 = %c0_i32_39 to %31 step %c1_i32_41  : i32 {
      %c1_i32_52 = arith.constant 1 : i32
      %40 = arith.muli %arg15, %c1_i32_52 : i32
      %c0_i32_53 = arith.constant 0 : i32
      %41 = arith.addi %c0_i32_53, %40 : i32
      %c8_i32_54 = arith.constant 8 : i32
      %42 = arith.muli %41, %c8_i32_54 : i32
      %43 = tpu.assume_multiple %42, 8 : i32
      %c0_55 = arith.constant 0 : index
      %c0_56 = arith.constant 0 : index
      %44 = vector.load %arg13[%c0_55, %c0_56] : memref<8x32xf32, #tpu.memory_space<vmem>>, vector<8x32xf32>
      %c0_57 = arith.constant 0 : index
      %c0_58 = arith.constant 0 : index
      %45 = vector.load %arg14[%c0_57, %c0_58] : memref<8x32xf32, #tpu.memory_space<vmem>>, vector<8x32xf32>
      %46 = arith.index_cast %43 : i32 to index
      %c0_59 = arith.constant 0 : index
      %47 = vector.load %arg12[%46, %c0_59] : memref<64x128xf32, #tpu.memory_space<vmem>>, vector<8x128xf32>
      %c0_60 = arith.constant 0 : index
      %c0_61 = arith.constant 0 : index
      %48 = vector.load %arg7[%c0_60, %c0_61] : memref<32x128xf32, #tpu.memory_space<vmem>>, vector<32x128xf32>
      %cst_62 = arith.constant dense<0.000000e+00> : vector<8x128xf32>
      %49 = tpu.matmul %44, %48, %cst_62 {dimension_numbers = #tpu.dot_dimension_numbers<[1], [0], [0], [1], [0, 0, 1, 1], [], []>} : vector<8x32xf32>, vector<32x128xf32>, vector<8x128xf32> -> vector<8x128xf32>
      %50 = arith.addf %47, %49 : vector<8x128xf32>
      %51 = vector.extract_strided_slice %50 {offsets = [0, 0], sizes = [8, 32], strides = [1, 1]} : vector<8x128xf32> to vector<8x32xf32>
      %52 = arith.negf %51 : vector<8x32xf32>
      %53 = math.exp %52 : vector<8x32xf32>
      %cst_63 = arith.constant 1.000000e+00 : f32
      %54 = vector.broadcast %cst_63 : f32 to vector<8x32xf32>
      %55 = arith.addf %54, %53 : vector<8x32xf32>
      %56 = arith.divf %54, %55 : vector<8x32xf32>
      %57 = vector.extract_strided_slice %50 {offsets = [0, 32], sizes = [8, 32], strides = [1, 1]} : vector<8x128xf32> to vector<8x32xf32>
      %58 = arith.negf %57 : vector<8x32xf32>
      %59 = math.exp %58 : vector<8x32xf32>
      %cst_64 = arith.constant 1.000000e+00 : f32
      %60 = vector.broadcast %cst_64 : f32 to vector<8x32xf32>
      %61 = arith.addf %60, %59 : vector<8x32xf32>
      %62 = arith.divf %60, %61 : vector<8x32xf32>
      %63 = vector.extract_strided_slice %50 {offsets = [0, 64], sizes = [8, 32], strides = [1, 1]} : vector<8x128xf32> to vector<8x32xf32>
      %64 = math.tanh %63 : vector<8x32xf32>
      %65 = vector.extract_strided_slice %50 {offsets = [0, 96], sizes = [8, 32], strides = [1, 1]} : vector<8x128xf32> to vector<8x32xf32>
      %66 = arith.negf %65 : vector<8x32xf32>
      %67 = math.exp %66 : vector<8x32xf32>
      %cst_65 = arith.constant 1.000000e+00 : f32
      %68 = vector.broadcast %cst_65 : f32 to vector<8x32xf32>
      %69 = arith.addf %68, %67 : vector<8x32xf32>
      %70 = arith.divf %68, %69 : vector<8x32xf32>
      %71 = arith.mulf %62, %45 : vector<8x32xf32>
      %72 = arith.mulf %56, %64 : vector<8x32xf32>
      %73 = arith.addf %71, %72 : vector<8x32xf32>
      %74 = math.tanh %73 : vector<8x32xf32>
      %75 = arith.mulf %70, %74 : vector<8x32xf32>
      %c0_66 = arith.constant 0 : index
      %c0_67 = arith.constant 0 : index
      %76 = vector.load %arg1[%c0_66, %c0_67] : memref<8x1xi32, #tpu.memory_space<vmem>>, vector<8x1xi32>
      %77 = vector.broadcast %41 : i32 to vector<8x1xi32>
      %78 = arith.cmpi slt, %77, %76 : vector<8x1xi32>
      %79 = vector.shape_cast %78 : vector<8x1xi1> to vector<8x1xi1>
      %80 = vector.broadcast %79 : vector<8x1xi1> to vector<8x32xi1>
      %81 = arith.select %80, %75, %44 : vector<8x32xi1>, vector<8x32xf32>
      %82 = vector.shape_cast %78 : vector<8x1xi1> to vector<8x1xi1>
      %83 = vector.broadcast %82 : vector<8x1xi1> to vector<8x32xi1>
      %84 = arith.select %83, %73, %45 : vector<8x32xi1>, vector<8x32xf32>
      %c0_68 = arith.constant 0 : index
      %c0_69 = arith.constant 0 : index
      %85 = vector.load %arg13[%c0_68, %c0_69] : memref<8x32xf32, #tpu.memory_space<vmem>>, vector<8x32xf32>
      tpu.vector_store %arg13[%c0_68, %c0_69], %81 {strides = array<i32>} : memref<8x32xf32, #tpu.memory_space<vmem>>, vector<8x32xf32>,
      %c0_70 = arith.constant 0 : index
      %c0_71 = arith.constant 0 : index
      %86 = vector.load %arg14[%c0_70, %c0_71] : memref<8x32xf32, #tpu.memory_space<vmem>>, vector<8x32xf32>
      tpu.vector_store %arg14[%c0_70, %c0_71], %84 {strides = array<i32>} : memref<8x32xf32, #tpu.memory_space<vmem>>, vector<8x32xf32>,
    }
    %c8_i32_42 = arith.constant 8 : i32
    %c0_43 = arith.constant 0 : index
    %c0_44 = arith.constant 0 : index
    %32 = vector.load %arg13[%c0_43, %c0_44] : memref<8x32xf32, #tpu.memory_space<vmem>>, vector<8x32xf32>
    %c1 = arith.constant 1 : index
    %c0_45 = arith.constant 0 : index
    %c0_46 = arith.constant 0 : index
    %33 = vector.load %arg9[%c1, %c0_45, %c0_46] : memref<2x8x32xf32, #tpu.memory_space<vmem>>, vector<1x8x32xf32>
    %34 = vector.shape_cast %33 : vector<1x8x32xf32> to vector<8x32xf32>
    %35 = vector.shape_cast %32 : vector<8x32xf32> to vector<1x8x32xf32>
    tpu.vector_store %arg9[%c1, %c0_45, %c0_46], %35 {strides = array<i32>} : memref<2x8x32xf32, #tpu.memory_space<vmem>>, vector<1x8x32xf32>,
    %c0_47 = arith.constant 0 : index
    %c0_48 = arith.constant 0 : index
    %36 = vector.load %arg14[%c0_47, %c0_48] : memref<8x32xf32, #tpu.memory_space<vmem>>, vector<8x32xf32>
    %c1_49 = arith.constant 1 : index
    %c0_50 = arith.constant 0 : index
    %c0_51 = arith.constant 0 : index
    %37 = vector.load %arg10[%c1_49, %c0_50, %c0_51] : memref<2x8x32xf32, #tpu.memory_space<vmem>>, vector<1x8x32xf32>
    %38 = vector.shape_cast %37 : vector<1x8x32xf32> to vector<8x32xf32>
    %39 = vector.shape_cast %36 : vector<8x32xf32> to vector<1x8x32xf32>
    tpu.vector_store %arg10[%c1_49, %c0_50, %c0_51], %39 {strides = array<i32>} : memref<2x8x32xf32, #tpu.memory_space<vmem>>, vector<1x8x32xf32>,
    return
  }
  func.func @transform_0(%arg0: i32) -> (i32, i32) {
    %c0_i32 = arith.constant 0 : i32
    %c0_i32_0 = arith.constant 0 : i32
    %c0_i32_1 = arith.constant 0 : i32
    return %c0_i32, %c0_i32_0 : i32, i32
  }
  func.func @transform_1(%arg0: i32) -> (i32, i32) {
    %c0_i32 = arith.constant 0 : i32
    %c0_i32_0 = arith.constant 0 : i32
    %c0_i32_1 = arith.constant 0 : i32
    return %c0_i32, %c0_i32_0 : i32, i32
  }
  func.func @transform_2(%arg0: i32) -> (i32, i32) {
    %c0_i32 = arith.constant 0 : i32
    %c0_i32_0 = arith.constant 0 : i32
    %c0_i32_1 = arith.constant 0 : i32
    return %c0_i32, %c0_i32_0 : i32, i32
  }
  func.func @transform_3(%arg0: i32) -> (i32, i32) {
    %c0_i32 = arith.constant 0 : i32
    %c0_i32_0 = arith.constant 0 : i32
    %c0_i32_1 = arith.constant 0 : i32
    return %c0_i32, %c0_i32_0 : i32, i32
  }
  func.func @transform_4(%arg0: i32) -> (i32, i32) {
    %c0_i32 = arith.constant 0 : i32
    %c0_i32_0 = arith.constant 0 : i32
    %c0_i32_1 = arith.constant 0 : i32
    return %c0_i32, %c0_i32_0 : i32, i32
  }
  func.func @transform_5(%arg0: i32) -> (i32, i32) {
    %c0_i32 = arith.constant 0 : i32
    %c0_i32_0 = arith.constant 0 : i32
    %c0_i32_1 = arith.constant 0 : i32
    return %c0_i32, %c0_i32_0 : i32, i32
  }
  func.func @transform_6(%arg0: i32) -> (i32, i32) {
    %c0_i32 = arith.constant 0 : i32
    %c0_i32_0 = arith.constant 0 : i32
    %c0_i32_1 = arith.constant 0 : i32
    return %c0_i32, %c0_i32_0 : i32, i32
  }
  func.func @transform_7(%arg0: i32) -> (i32, i32) {
    %c0_i32 = arith.constant 0 : i32
    %c0_i32_0 = arith.constant 0 : i32
    %c0_i32_1 = arith.constant 0 : i32
    return %c0_i32, %c0_i32_0 : i32, i32
  }
  func.func @transform_8(%arg0: i32) -> (i32, i32, i32) {
    %c0_i32 = arith.constant 0 : i32
    %c0_i32_0 = arith.constant 0 : i32
    %c0_i32_1 = arith.constant 0 : i32
    %c0_i32_2 = arith.constant 0 : i32
    return %c0_i32, %c0_i32_0, %c0_i32_1 : i32, i32, i32
  }
  func.func @transform_9(%arg0: i32) -> (i32, i32, i32) {
    %c0_i32 = arith.constant 0 : i32
    %c0_i32_0 = arith.constant 0 : i32
    %c0_i32_1 = arith.constant 0 : i32
    %c0_i32_2 = arith.constant 0 : i32
    return %c0_i32, %c0_i32_0, %c0_i32_1 : i32, i32, i32
  }
}

</mosaic_0001>

<llo_original>
// kernel: tpu_custom_call.1
$region0: #{tpu_custom_call.1}
  #allocation0 [shape = 'u32[]', space=smem, size = 0x4, offset = 0x4, fixed_abs, tag = 'smem constant byte address 0x4 - core index']
  #allocation1 [shape = 'u32[144,128]{1,0:T(1,128)}', space=vmem, size = 0x12000, scoped, tag = 'internal scratch']
  #allocation2 [shape = 'f32[64,32]{1,0:T(8,128)}', space=vmem, size = 0x8000, scoped, tag = 'scratch operand']
  #allocation3 [shape = 'f32[64,128]{1,0:T(8,128)}', space=vmem, size = 0x8000, scoped, tag = 'scratch operand']
  #allocation4 [shape = 'f32[8,32]{1,0:T(8,128)}', space=vmem, size = 0x1000, scoped, tag = 'scratch operand']
  #allocation5 [shape = 'f32[8,32]{1,0:T(8,128)}', space=vmem, size = 0x1000, scoped, tag = 'scratch operand']
  %s0 = inlined_call_operand.vmem [shape: s32[8,1], index: 0, kind: input, shape index: {}]
  %s1 = inlined_call_operand.vmem [shape: f32[64,32], index: 1, kind: input, shape index: {}]
  %s2 = inlined_call_operand.vmem [shape: f32[32,128], index: 2, kind: input, shape index: {}]
  %s3 = inlined_call_operand.vmem [shape: f32[32,128], index: 3, kind: input, shape index: {}]
  %s4 = inlined_call_operand.vmem [shape: f32[1,128], index: 4, kind: input, shape index: {}]
  %s5 = inlined_call_operand.vmem [shape: f32[32,128], index: 5, kind: input, shape index: {}]
  %s6 = inlined_call_operand.hbm [shape: f32[32,128], index: 6, kind: input, shape index: {}]
  %s7 = inlined_call_operand.vmem [shape: f32[1,128], index: 7, kind: input, shape index: {}]
  %s8 = inlined_call_operand.hbm [shape: f32[2,8,32], index: 8, kind: output, shape index: {0}]
  %s9 = inlined_call_operand.hbm [shape: f32[2,8,32], index: 9, kind: output, shape index: {1}]
  %10 = xla_tuple %s8, %s9
  %s11 = sld [smem:[#allocation0]]
  $region68: #{tpu_custom_call.1} parent=0
    _
  %s13 = ssub.s32 1, %s11
  %s14 = scalar_select 0, %s13, %s11
  $region1: #{tpu_custom_call.1} parent=0
    #allocation6 [shape = 'u8[16384]{0}', space=vmem, size = 0x4000, scoped, tag = 'input window, operand 6, single buffered']
    #allocation7 [shape = 's32[1]{0}', space=sflag, size = 0x4, scoped, tag = 'scoped memory for tpu_custom_call.1']
    #allocation8 [shape = 's32[1]{0}', space=sflag, size = 0x4, scoped, tag = 'scoped memory for tpu_custom_call.1']
    #allocation9 [shape = 'u8[8192]{0}', space=vmem, size = 0x2000, scoped, tag = 'output window, operand 0, single buffered']
    #allocation10 [shape = 'u8[8192]{0}', space=vmem, size = 0x2000, scoped, tag = 'output window, operand 1, single buffered']
    #allocation11 [shape = 's32[1]{0}', space=sflag, size = 0x4, scoped, tag = 'scoped memory for tpu_custom_call.1']
    %15 = vsyncpa [#allocation7], 0
    %16 = vsyncpa [#allocation8], 0
    %17 = vsyncpa [#allocation11], 0
    // Predicated region
    $region2: #{tpu_custom_call.1} parent=1 // pred_check
      _
    $region3: #{tpu_custom_call.1} parent=1 // pred_check_branch
      %19 = sbr.rel (0) target = $region5
    $region4: #{tpu_custom_call.1} parent=1 // pred_region
      _
    $region5: #{tpu_custom_call.1} parent=1 // pred_fallthru
      _
    // Predicated region
    $region6: #{tpu_custom_call.1} parent=1 // pred_check
      _
    $region7: #{tpu_custom_call.1} parent=1 // pred_check_branch
      %21 = sbr.rel (0) target = $region9
    $region8: #{tpu_custom_call.1} parent=1 // pred_region
      _
    $region9: #{tpu_custom_call.1} parent=1 // pred_fallthru
      _
    // Predicated region
    $region10: #{tpu_custom_call.1} parent=1 // pred_check
      _
    $region11: #{tpu_custom_call.1} parent=1 // pred_check_branch
      %23 = sbr.rel (0) target = $region13
    $region12: #{tpu_custom_call.1} parent=1 // pred_region
      _
    $region13: #{tpu_custom_call.1} parent=1 // pred_fallthru
      _
    // Predicated region
    $region14: #{tpu_custom_call.1} parent=1 // pred_check
      _
    $region15: #{tpu_custom_call.1} parent=1 // pred_check_branch
      %25 = sbr.rel (0) target = $region17
    $region16: #{tpu_custom_call.1} parent=1 // pred_region
      _
    $region17: #{tpu_custom_call.1} parent=1 // pred_fallthru
      _
    // Predicated region
    $region18: #{tpu_custom_call.1} parent=1 // pred_check
      _
    $region19: #{tpu_custom_call.1} parent=1 // pred_check_branch
      %27 = sbr.rel (0) target = $region21
    $region20: #{tpu_custom_call.1} parent=1 // pred_region
      _
    $region21: #{tpu_custom_call.1} parent=1 // pred_fallthru
      _
    // Predicated region
    $region22: #{tpu_custom_call.1} parent=1 // pred_check
      _
    $region23: #{tpu_custom_call.1} parent=1 // pred_check_branch
      %29 = sbr.rel (0) target = $region25
    $region24: #{tpu_custom_call.1} parent=1 // pred_region
      _
    $region25: #{tpu_custom_call.1} parent=1 // pred_fallthru
      _
    // Predicated region
    $region26: #{tpu_custom_call.1} parent=1 // pred_check
      _
    $region27: #{tpu_custom_call.1} parent=1 // pred_check_branch
      %31 = sbr.rel (0) target = $region29
    $region28: #{tpu_custom_call.1} parent=1 // pred_region
      %s33 = ssub.s32 512, 512
      %34 = vsyncadd [#allocation7], %s33
      %s35 = sshll.u32 [#allocation6], 4
      %s36 = int_to_ptr.vmem [resolvable:$true] %s35
      %41 = dma.hbm_to_vmem [thread:$0]  %s6, 512, %s36, [#allocation7], 128, 128, 8
    $region29: #{tpu_custom_call.1} parent=1 // pred_fallthru
      _
    // Predicated region
    $region30: #{tpu_custom_call.1} parent=1 // pred_check
      _
    $region31: #{tpu_custom_call.1} parent=1 // pred_check_branch
      %43 = sbr.rel (0) target = $region33
    $region32: #{tpu_custom_call.1} parent=1 // pred_region
      _
    $region33: #{tpu_custom_call.1} parent=1 // pred_fallthru
      _
    // Predicated region
    $region34: #{tpu_custom_call.1} parent=1 // pred_check
      _
    $region35: #{tpu_custom_call.1} parent=1 // pred_check_branch
      %45 = sbr.rel (0) target = $region37
    $region36: #{tpu_custom_call.1} parent=1 // pred_region
      %46 = dma.done [#allocation7], 512
    $region37: #{tpu_custom_call.1} parent=1 // pred_fallthru
      _
    %v47 = vld [vmem:[%s1] sm:$0xff]
    %v48 = vld [vmem:[%s1 + $0x8] sm:$0xff]
    %v49 = vld [vmem:[%s1 + $0x10] sm:$0xff]
    %v50 = vld [vmem:[%s1 + $0x18] sm:$0xff]
    %v51 = vld [vmem:[%s1 + $0x20] sm:$0xff]
    %v52 = vld [vmem:[%s1 + $0x28] sm:$0xff]
    %v53 = vld [vmem:[%s1 + $0x30] sm:$0xff]
    %v54 = vld [vmem:[%s1 + $0x38] sm:$0xff]
    %v55 = vld [vmem:[%s2] sm:$0xff]
    %v56 = vld [vmem:[%s2 + $0x8] sm:$0xff]
    %v57 = vld [vmem:[%s2 + $0x10] sm:$0xff]
    %v58 = vld [vmem:[%s2 + $0x18] sm:$0xff]
    %v59 = vld [vmem:[%s4] sm:$0x1]
    %v61 = vlaneseq
    %v62 = vshrl.u32 %v61, 7
    %v63 = vsub.s32 0, %v62
    %v64 = vrot.slane %v59, %v63
    %vm66 = vcmask 261120
    %v68 = vsel %vm66, %v47, 0
    %v71 = vsel %vm66, %v48, 0
    %v74 = vsel %vm66, %v49, 0
    %v77 = vsel %vm66, %v50, 0
    %v80 = vsel %vm66, %v51, 0
    %v83 = vsel %vm66, %v52, 0
    %v86 = vsel %vm66, %v53, 0
    %v89 = vsel %vm66, %v54, 0
    %91 = vmatprep.subr.mxu0 0.0
    %92 = vmatpush1.msra.mxu0 %v55
    %93 = vmatprep.subr.mxu0 0.0
    %94 = vmatpush1.msra.mxu0 %v56
    %95 = vmatprep.subr.mxu0 0.0
    %96 = vmatpush1.msra.mxu0 %v57
    %97 = vmatprep.subr.mxu0 0.0
    %98 = vmatpush1.msra.mxu0 %v58
    %99 = vmatprep.subr.mxu0 0.0
    %100 = vmatpush1.msra.mxu0 0.0
    %101 = vmatprep.subr.mxu0 0.0
    %102 = vmatpush1.msra.mxu0 0.0
    %103 = vmatprep.subr.mxu0 0.0
    %104 = vmatpush1.msra.mxu0 0.0
    %105 = vmatprep.subr.mxu0 0.0
    %106 = vmatpush1.msra.mxu0 0.0
    %107 = vmatprep.subr.mxu0 0.0
    %108 = vmatpush1.msra.mxu0 0.0
    %109 = vmatprep.subr.mxu0 0.0
    %110 = vmatpush1.msra.mxu0 0.0
    %111 = vmatprep.subr.mxu0 0.0
    %112 = vmatpush1.msra.mxu0 0.0
    %113 = vmatprep.subr.mxu0 0.0
    %114 = vmatpush1.msra.mxu0 0.0
    %115 = vmatprep.subr.mxu0 0.0
    %116 = vmatpush1.msra.mxu0 0.0
    %117 = vmatprep.subr.mxu0 0.0
    %118 = vmatpush1.msra.mxu0 0.0
    %119 = vmatprep.subr.mxu0 0.0
    %120 = vmatpush1.msra.mxu0 0.0
    %121 = vmatprep.subr.mxu0 0.0
    %122 = vmatpush1.msra.mxu0 0.0
    %123 = vmatprep.subr.mxu0 0.0
    %124 = vmatpush1.msra.mxu0 0.0
    %125 = vmatprep.subr.mxu0 0.0
    %126 = vmatpush1.msra.mxu0 0.0
    %127 = vmatprep.subr.mxu0 0.0
    %128 = vmatpush1.msra.mxu0 0.0
    %129 = vmatprep.subr.mxu0 0.0
    %130 = vmatpush1.msra.mxu0 0.0
    %131 = vmatprep.subr.mxu0 0.0
    %132 = vmatpush1.msra.mxu0 0.0
    %133 = vmatprep.subr.mxu0 0.0
    %134 = vmatpush1.msra.mxu0 0.0
    %135 = vmatprep.subr.mxu0 0.0
    %136 = vmatpush1.msra.mxu0 0.0
    %137 = vmatprep.subr.mxu0 0.0
    %138 = vmatpush1.msra.mxu0 0.0
    %139 = vmatprep.subr.mxu0 0.0
    %140 = vmatpush1.msra.mxu0 0.0
    %141 = vmatprep.subr.mxu0 0.0
    %142 = vmatpush1.msra.mxu0 0.0
    %143 = vmatprep.subr.mxu0 0.0
    %144 = vmatpush1.msra.mxu0 0.0
    %145 = vmatprep.subr.mxu0 0.0
    %146 = vmatpush1.msra.mxu0 0.0
    %147 = vmatprep.subr.mxu0 0.0
    %148 = vmatpush1.msra.mxu0 0.0
    %149 = vmatprep.subr.mxu0 0.0
    %150 = vmatpush1.msra.mxu0 0.0
    %151 = vmatprep.subr.mxu0 0.0
    %152 = vmatpush1.msra.mxu0 0.0
    %153 = vmatprep.subr.mxu0 0.0
    %154 = vmatpush1.msra.mxu0 0.0
    %155 = vmatprep.mubr.f32.mxu0 0.0
    %156 = vmatmul.mubr.f32.gmra.mrb[0].mxu0 %v68
    %v157 = vpop.f32.mrb[0].mxu0
    %v158 = vadd.f32 %v64, %v157
    %v159 = vpop.f32.mrb[0].mxu0
    %160 = vmatprep.mubr.f32.mxu0 0.0
    %161 = vmatmul.mubr.f32.gmra.mrb[0].mxu0 %v71
    %v162 = vpop.f32.mrb[0].mxu0
    %v163 = vadd.f32 %v64, %v162
    %v164 = vpop.f32.mrb[0].mxu0
    %165 = vmatprep.mubr.f32.mxu0 0.0
    %166 = vmatmul.mubr.f32.gmra.mrb[0].mxu0 %v74
    %v167 = vpop.f32.mrb[0].mxu0
    %v168 = vadd.f32 %v64, %v167
    %v169 = vpop.f32.mrb[0].mxu0
    %170 = vmatprep.mubr.f32.mxu0 0.0
    %171 = vmatmul.mubr.f32.gmra.mrb[0].mxu0 %v77
    %v172 = vpop.f32.mrb[0].mxu0
    %v173 = vadd.f32 %v64, %v172
    %v174 = vpop.f32.mrb[0].mxu0
    %175 = vmatprep.mubr.f32.mxu0 0.0
    %176 = vmatmul.mubr.f32.gmra.mrb[0].mxu0 %v80
    %v177 = vpop.f32.mrb[0].mxu0
    %v178 = vadd.f32 %v64, %v177
    %v179 = vpop.f32.mrb[0].mxu0
    %180 = vmatprep.mubr.f32.mxu0 0.0
    %181 = vmatmul.mubr.f32.gmra.mrb[0].mxu0 %v83
    %v182 = vpop.f32.mrb[0].mxu0
    %v183 = vadd.f32 %v64, %v182
    %v184 = vpop.f32.mrb[0].mxu0
    %185 = vmatprep.mubr.f32.mxu0 0.0
    %186 = vmatmul.mubr.f32.gmra.mrb[0].mxu0 %v86
    %v187 = vpop.f32.mrb[0].mxu0
    %v188 = vadd.f32 %v64, %v187
    %v189 = vpop.f32.mrb[0].mxu0
    %190 = vmatprep.mubr.f32.mxu0 0.0
    %191 = vmatmul.mubr.f32.gmra.mrb[0].mxu0 %v89
    %v192 = vpop.f32.mrb[0].mxu0
    %v193 = vadd.f32 %v64, %v192
    %v194 = vpop.f32.mrb[0].mxu0
    %195 = vdwg.mxu0
    %196 = vst [vmem:[#allocation3] sm:$0xff] %v158
    %197 = vst [vmem:[#allocation3 + $0x8] sm:$0xff] %v163
    %198 = vst [vmem:[#allocation3 + $0x10] sm:$0xff] %v168
    %199 = vst [vmem:[#allocation3 + $0x18] sm:$0xff] %v173
    %200 = vst [vmem:[#allocation3 + $0x20] sm:$0xff] %v178
    %201 = vst [vmem:[#allocation3 + $0x28] sm:$0xff] %v183
    %202 = vst [vmem:[#allocation3 + $0x30] sm:$0xff] %v188
    %203 = vst [vmem:[#allocation3 + $0x38] sm:$0xff] %v193
    %204 = vst.msk [vmem:[#allocation4] sm:$0xff] %vm66, 0.0
    %205 = vst.msk [vmem:[#allocation5] sm:$0xff] %vm66, 0.0
    loop: start=0, step=1, limit=8
    $region38: #{tpu_custom_call.1} parent=1 // loop_pre_header
      _
    $region39: #{tpu_custom_call.1} parent=1 // loop_header
      %s207 = sphi 0, %s211
      %p208 = scmp.ge.s32.totalorder %s207, 8
    $region40: #{tpu_custom_call.1} parent=1 // loop_header_branch
      %210 = sbr.rel (%p208) target = $region44
    $region41: #{tpu_custom_call.1} parent=1 // loop_body
      %s212 = smul.u32 %s207, 8
      %v213 = vld [vmem:[#allocation4] sm:$0xff]
      %v214 = vld [vmem:[#allocation5] sm:$0xff]
      %s215 = scalar_lea.vmem [#allocation3], %s212
      %v216 = vld [vmem:[%s215] sm:$0xff]
      %v217 = vld [vmem:[%s3] sm:$0xff]
      %v218 = vld [vmem:[%s3 + $0x8] sm:$0xff]
      %v219 = vld [vmem:[%s3 + $0x10] sm:$0xff]
      %v220 = vld [vmem:[%s3 + $0x18] sm:$0xff]
      %v222 = vsel %vm66, %v213, 0
      %224 = vmatprep.subr.mxu0 0.0
      %225 = vmatpush1.msra.mxu0 %v217
      %226 = vmatprep.subr.mxu0 0.0
      %227 = vmatpush1.msra.mxu0 %v218
      %228 = vmatprep.subr.mxu0 0.0
      %229 = vmatpush1.msra.mxu0 %v219
      %230 = vmatprep.subr.mxu0 0.0
      %231 = vmatpush1.msra.mxu0 %v220
      %232 = vmatprep.subr.mxu0 0.0
      %233 = vmatpush1.msra.mxu0 0.0
      %234 = vmatprep.subr.mxu0 0.0
      %235 = vmatpush1.msra.mxu0 0.0
      %236 = vmatprep.subr.mxu0 0.0
      %237 = vmatpush1.msra.mxu0 0.0
      %238 = vmatprep.subr.mxu0 0.0
      %239 = vmatpush1.msra.mxu0 0.0
      %240 = vmatprep.subr.mxu0 0.0
      %241 = vmatpush1.msra.mxu0 0.0
      %242 = vmatprep.subr.mxu0 0.0
      %243 = vmatpush1.msra.mxu0 0.0
      %244 = vmatprep.subr.mxu0 0.0
      %245 = vmatpush1.msra.mxu0 0.0
      %246 = vmatprep.subr.mxu0 0.0
      %247 = vmatpush1.msra.mxu0 0.0
      %248 = vmatprep.subr.mxu0 0.0
      %249 = vmatpush1.msra.mxu0 0.0
      %250 = vmatprep.subr.mxu0 0.0
      %251 = vmatpush1.msra.mxu0 0.0
      %252 = vmatprep.subr.mxu0 0.0
      %253 = vmatpush1.msra.mxu0 0.0
      %254 = vmatprep.subr.mxu0 0.0
      %255 = vmatpush1.msra.mxu0 0.0
      %256 = vmatprep.subr.mxu0 0.0
      %257 = vmatpush1.msra.mxu0 0.0
      %258 = vmatprep.subr.mxu0 0.0
      %259 = vmatpush1.msra.mxu0 0.0
      %260 = vmatprep.subr.mxu0 0.0
      %261 = vmatpush1.msra.mxu0 0.0
      %262 = vmatprep.subr.mxu0 0.0
      %263 = vmatpush1.msra.mxu0 0.0
      %264 = vmatprep.subr.mxu0 0.0
      %265 = vmatpush1.msra.mxu0 0.0
      %266 = vmatprep.subr.mxu0 0.0
      %267 = vmatpush1.msra.mxu0 0.0
      %268 = vmatprep.subr.mxu0 0.0
      %269 = vmatpush1.msra.mxu0 0.0
      %270 = vmatprep.subr.mxu0 0.0
      %271 = vmatpush1.msra.mxu0 0.0
      %272 = vmatprep.subr.mxu0 0.0
      %273 = vmatpush1.msra.mxu0 0.0
      %274 = vmatprep.subr.mxu0 0.0
      %275 = vmatpush1.msra.mxu0 0.0
      %276 = vmatprep.subr.mxu0 0.0
      %277 = vmatpush1.msra.mxu0 0.0
      %278 = vmatprep.subr.mxu0 0.0
      %279 = vmatpush1.msra.mxu0 0.0
      %280 = vmatprep.subr.mxu0 0.0
      %281 = vmatpush1.msra.mxu0 0.0
      %282 = vmatprep.subr.mxu0 0.0
      %283 = vmatpush1.msra.mxu0 0.0
      %284 = vmatprep.subr.mxu0 0.0
      %285 = vmatpush1.msra.mxu0 0.0
      %286 = vmatprep.subr.mxu0 0.0
      %287 = vmatpush1.msra.mxu0 0.0
      %288 = vmatprep.mubr.f32.mxu0 0.0
      %289 = vmatmul.mubr.f32.gmra.mrb[0].mxu0 %v222
      %v290 = vpop.f32.mrb[0].mxu0
      %v291 = vadd.f32 0.0, %v290
      %v292 = vpop.f32.mrb[0].mxu0
      %293 = vdwg.mxu0
      %v294 = vadd.f32 %v216, %v291
      %v295 = vxor.u32 %v294, 2147483648
      %v296 = vmul.f32 %v295, 1.442695
      %v297 = vpow.pop %v296
      %v298 = vadd.f32 %v297, 1.0
      %v299 = vrcp.pop %v298
      %v300 = vmul.f32 1.0, %v299
      %v301 = vtanh.pop %v294
      %303 = vrot.lane.b32.xlu0 %v214, 32
      %v304 = vpop.permute.xlu0 %303
      %v306 = vmul.f32 %v300, %v304
      %308 = vrot.lane.b32.xlu0 %v301, 64
      %v309 = vpop.permute.xlu0 %308
      %v311 = vmul.f32 %v300, %v309
      %313 = vrot.lane.b32.xlu0 %v311, 32
      %v314 = vpop.permute.xlu0 %313
      %v316 = vadd.f32 %v306, %v314
      %v317 = vtanh.pop %v316
      %319 = vrot.lane.b32.xlu0 %v317, 64
      %v320 = vpop.permute.xlu0 %319
      %v322 = vmul.f32 %v300, %v320
      %v323 = vld [vmem:[%s0] sm:$0xff]
      %v324 = vstv %s207
      %vm325 = vcmp.lt.s32.totalorder %v324, %v323
      %v326 = vsel %vm325, 1, 0
      %327 = vset.pattern.permute.xlu0 0
      %328 = vperm.xlu0 %327, %v326
      %v329 = vpop.permute.xlu0 %328
      %vm330 = vcmp.eq.s32.totalorder %v329, 1
      %331 = vrot.lane.b32.xlu0 %v213, 96
      %v332 = vpop.permute.xlu0 %331
      %v334 = vsel %vm330, %v322, %v332
      %v335 = vsel %vm330, %v316, %v304
      %337 = vrot.lane.b32.xlu0 %v334, 32
      %v338 = vpop.permute.xlu0 %337
      %340 = vst.msk [vmem:[#allocation4] sm:$0xff] %vm66, %v338
      %342 = vrot.lane.b32.xlu0 %v335, 96
      %v343 = vpop.permute.xlu0 %342
      %345 = vst.msk [vmem:[#allocation5] sm:$0xff] %vm66, %v343
      %s346 = scalar_lea.vmem [#allocation2], %s212
      %347 = vst.msk [vmem:[%s346] sm:$0xff] %vm66, %v338
    $region42: #{tpu_custom_call.1} parent=1 // loop_footer
      %s211 = sadd.s32 1, %s207
    $region43: #{tpu_custom_call.1} parent=1 // loop_footer_branch
      %206 = sbr.rel target = $region39
    $region44: #{tpu_custom_call.1} parent=1 // loop_exit
      _
    %v348 = vld [vmem:[#allocation4] sm:$0xff]
    %349 = vst.msk [vmem:[#allocation9] sm:$0xff] %vm66, %v348
    %v350 = vld [vmem:[#allocation5] sm:$0xff]
    %351 = vst.msk [vmem:[#allocation10] sm:$0xff] %vm66, %v350
    %v352 = vld [vmem:[#allocation2] sm:$0xff]
    %v353 = vld [vmem:[#allocation2 + $0x8] sm:$0xff]
    %v354 = vld [vmem:[#allocation2 + $0x10] sm:$0xff]
    %v355 = vld [vmem:[#allocation2 + $0x18] sm:$0xff]
    %v356 = vld [vmem:[#allocation2 + $0x20] sm:$0xff]
    %v357 = vld [vmem:[#allocation2 + $0x28] sm:$0xff]
    %v358 = vld [vmem:[#allocation2 + $0x30] sm:$0xff]
    %v359 = vld [vmem:[#allocation2 + $0x38] sm:$0xff]
    %v360 = vld [vmem:[%s5] sm:$0xff]
    %v361 = vld [vmem:[%s5 + $0x8] sm:$0xff]
    %v362 = vld [vmem:[%s5 + $0x10] sm:$0xff]
    %v363 = vld [vmem:[%s5 + $0x18] sm:$0xff]
    %v364 = vld [vmem:[%s7] sm:$0x1]
    %v366 = vlaneseq
    %v367 = vshrl.u32 %v366, 7
    %v368 = vsub.s32 0, %v367
    %v369 = vrot.slane %v364, %v368
    %v372 = vsel %vm66, %v352, 0
    %v375 = vsel %vm66, %v353, 0
    %v378 = vsel %vm66, %v354, 0
    %v381 = vsel %vm66, %v355, 0
    %v384 = vsel %vm66, %v356, 0
    %v387 = vsel %vm66, %v357, 0
    %v390 = vsel %vm66, %v358, 0
    %v393 = vsel %vm66, %v359, 0
    %395 = vmatprep.subr.mxu0 0.0
    %396 = vmatpush1.msra.mxu0 %v360
    %397 = vmatprep.subr.mxu0 0.0
    %398 = vmatpush1.msra.mxu0 %v361
    %399 = vmatprep.subr.mxu0 0.0
    %400 = vmatpush1.msra.mxu0 %v362
    %401 = vmatprep.subr.mxu0 0.0
    %402 = vmatpush1.msra.mxu0 %v363
    %403 = vmatprep.subr.mxu0 0.0
    %404 = vmatpush1.msra.mxu0 0.0
    %405 = vmatprep.subr.mxu0 0.0
    %406 = vmatpush1.msra.mxu0 0.0
    %407 = vmatprep.subr.mxu0 0.0
    %408 = vmatpush1.msra.mxu0 0.0
    %409 = vmatprep.subr.mxu0 0.0
    %410 = vmatpush1.msra.mxu0 0.0
    %411 = vmatprep.subr.mxu0 0.0
    %412 = vmatpush1.msra.mxu0 0.0
    %413 = vmatprep.subr.mxu0 0.0
    %414 = vmatpush1.msra.mxu0 0.0
    %415 = vmatprep.subr.mxu0 0.0
    %416 = vmatpush1.msra.mxu0 0.0
    %417 = vmatprep.subr.mxu0 0.0
    %418 = vmatpush1.msra.mxu0 0.0
    %419 = vmatprep.subr.mxu0 0.0
    %420 = vmatpush1.msra.mxu0 0.0
    %421 = vmatprep.subr.mxu0 0.0
    %422 = vmatpush1.msra.mxu0 0.0
    %423 = vmatprep.subr.mxu0 0.0
    %424 = vmatpush1.msra.mxu0 0.0
    %425 = vmatprep.subr.mxu0 0.0
    %426 = vmatpush1.msra.mxu0 0.0
    %427 = vmatprep.subr.mxu0 0.0
    %428 = vmatpush1.msra.mxu0 0.0
    %429 = vmatprep.subr.mxu0 0.0
    %430 = vmatpush1.msra.mxu0 0.0
    %431 = vmatprep.subr.mxu0 0.0
    %432 = vmatpush1.msra.mxu0 0.0
    %433 = vmatprep.subr.mxu0 0.0
    %434 = vmatpush1.msra.mxu0 0.0
    %435 = vmatprep.subr.mxu0 0.0
    %436 = vmatpush1.msra.mxu0 0.0
    %437 = vmatprep.subr.mxu0 0.0
    %438 = vmatpush1.msra.mxu0 0.0
    %439 = vmatprep.subr.mxu0 0.0
    %440 = vmatpush1.msra.mxu0 0.0
    %441 = vmatprep.subr.mxu0 0.0
    %442 = vmatpush1.msra.mxu0 0.0
    %443 = vmatprep.subr.mxu0 0.0
    %444 = vmatpush1.msra.mxu0 0.0
    %445 = vmatprep.subr.mxu0 0.0
    %446 = vmatpush1.msra.mxu0 0.0
    %447 = vmatprep.subr.mxu0 0.0
    %448 = vmatpush1.msra.mxu0 0.0
    %449 = vmatprep.subr.mxu0 0.0
    %450 = vmatpush1.msra.mxu0 0.0
    %451 = vmatprep.subr.mxu0 0.0
    %452 = vmatpush1.msra.mxu0 0.0
    %453 = vmatprep.subr.mxu0 0.0
    %454 = vmatpush1.msra.mxu0 0.0
    %455 = vmatprep.subr.mxu0 0.0
    %456 = vmatpush1.msra.mxu0 0.0
    %457 = vmatprep.subr.mxu0 0.0
    %458 = vmatpush1.msra.mxu0 0.0
    %459 = vmatprep.mubr.f32.mxu0 0.0
    %460 = vmatmul.mubr.f32.gmra.mrb[0].mxu0 %v372
    %v461 = vpop.f32.mrb[0].mxu0
    %v462 = vadd.f32 %v369, %v461
    %v463 = vpop.f32.mrb[0].mxu0
    %464 = vmatprep.mubr.f32.mxu0 0.0
    %465 = vmatmul.mubr.f32.gmra.mrb[0].mxu0 %v375
    %v466 = vpop.f32.mrb[0].mxu0
    %v467 = vadd.f32 %v369, %v466
    %v468 = vpop.f32.mrb[0].mxu0
    %469 = vmatprep.mubr.f32.mxu0 0.0
    %470 = vmatmul.mubr.f32.gmra.mrb[0].mxu0 %v378
    %v471 = vpop.f32.mrb[0].mxu0
    %v472 = vadd.f32 %v369, %v471
    %v473 = vpop.f32.mrb[0].mxu0
    %474 = vmatprep.mubr.f32.mxu0 0.0
    %475 = vmatmul.mubr.f32.gmra.mrb[0].mxu0 %v381
    %v476 = vpop.f32.mrb[0].mxu0
    %v477 = vadd.f32 %v369, %v476
    %v478 = vpop.f32.mrb[0].mxu0
    %479 = vmatprep.mubr.f32.mxu0 0.0
    %480 = vmatmul.mubr.f32.gmra.mrb[0].mxu0 %v384
    %v481 = vpop.f32.mrb[0].mxu0
    %v482 = vadd.f32 %v369, %v481
    %v483 = vpop.f32.mrb[0].mxu0
    %484 = vmatprep.mubr.f32.mxu0 0.0
    %485 = vmatmul.mubr.f32.gmra.mrb[0].mxu0 %v387
    %v486 = vpop.f32.mrb[0].mxu0
    %v487 = vadd.f32 %v369, %v486
    %v488 = vpop.f32.mrb[0].mxu0
    %489 = vmatprep.mubr.f32.mxu0 0.0
    %490 = vmatmul.mubr.f32.gmra.mrb[0].mxu0 %v390
    %v491 = vpop.f32.mrb[0].mxu0
    %v492 = vadd.f32 %v369, %v491
    %v493 = vpop.f32.mrb[0].mxu0
    %494 = vmatprep.mubr.f32.mxu0 0.0
    %495 = vmatmul.mubr.f32.gmra.mrb[0].mxu0 %v393
    %v496 = vpop.f32.mrb[0].mxu0
    %v497 = vadd.f32 %v369, %v496
    %v498 = vpop.f32.mrb[0].mxu0
    %499 = vdwg.mxu0
    %500 = vst [vmem:[#allocation3] sm:$0xff] %v462
    %501 = vst [vmem:[#allocation3 + $0x8] sm:$0xff] %v467
    %502 = vst [vmem:[#allocation3 + $0x10] sm:$0xff] %v472
    %503 = vst [vmem:[#allocation3 + $0x18] sm:$0xff] %v477
    %504 = vst [vmem:[#allocation3 + $0x20] sm:$0xff] %v482
    %505 = vst [vmem:[#allocation3 + $0x28] sm:$0xff] %v487
    %506 = vst [vmem:[#allocation3 + $0x30] sm:$0xff] %v492
    %507 = vst [vmem:[#allocation3 + $0x38] sm:$0xff] %v497
    %508 = vst.msk [vmem:[#allocation4] sm:$0xff] %vm66, 0.0
    %509 = vst.msk [vmem:[#allocation5] sm:$0xff] %vm66, 0.0
    loop: start=0, step=1, limit=8
    $region45: #{tpu_custom_call.1} parent=1 // loop_pre_header
      _
    $region46: #{tpu_custom_call.1} parent=1 // loop_header
      %s511 = sphi 0, %s515
      %p512 = scmp.ge.s32.totalorder %s511, 8
    $region47: #{tpu_custom_call.1} parent=1 // loop_header_branch
      %514 = sbr.rel (%p512) target = $region51
    $region48: #{tpu_custom_call.1} parent=1 // loop_body
      %s516 = smul.u32 %s511, 8
      %v517 = vld [vmem:[#allocation4] sm:$0xff]
      %v518 = vld [vmem:[#allocation5] sm:$0xff]
      %s519 = scalar_lea.vmem [#allocation3], %s516
      %v520 = vld [vmem:[%s519] sm:$0xff]
      %v521 = vld [vmem:[#allocation6] sm:$0xff]
      %v522 = vld [vmem:[#allocation6 + $0x8] sm:$0xff]
      %v523 = vld [vmem:[#allocation6 + $0x10] sm:$0xff]
      %v524 = vld [vmem:[#allocation6 + $0x18] sm:$0xff]
      %v526 = vsel %vm66, %v517, 0
      %528 = vmatprep.subr.mxu0 0.0
      %529 = vmatpush1.msra.mxu0 %v521
      %530 = vmatprep.subr.mxu0 0.0
      %531 = vmatpush1.msra.mxu0 %v522
      %532 = vmatprep.subr.mxu0 0.0
      %533 = vmatpush1.msra.mxu0 %v523
      %534 = vmatprep.subr.mxu0 0.0
      %535 = vmatpush1.msra.mxu0 %v524
      %536 = vmatprep.subr.mxu0 0.0
      %537 = vmatpush1.msra.mxu0 0.0
      %538 = vmatprep.subr.mxu0 0.0
      %539 = vmatpush1.msra.mxu0 0.0
      %540 = vmatprep.subr.mxu0 0.0
      %541 = vmatpush1.msra.mxu0 0.0
      %542 = vmatprep.subr.mxu0 0.0
      %543 = vmatpush1.msra.mxu0 0.0
      %544 = vmatprep.subr.mxu0 0.0
      %545 = vmatpush1.msra.mxu0 0.0
      %546 = vmatprep.subr.mxu0 0.0
      %547 = vmatpush1.msra.mxu0 0.0
      %548 = vmatprep.subr.mxu0 0.0
      %549 = vmatpush1.msra.mxu0 0.0
      %550 = vmatprep.subr.mxu0 0.0
      %551 = vmatpush1.msra.mxu0 0.0
      %552 = vmatprep.subr.mxu0 0.0
      %553 = vmatpush1.msra.mxu0 0.0
      %554 = vmatprep.subr.mxu0 0.0
      %555 = vmatpush1.msra.mxu0 0.0
      %556 = vmatprep.subr.mxu0 0.0
      %557 = vmatpush1.msra.mxu0 0.0
      %558 = vmatprep.subr.mxu0 0.0
      %559 = vmatpush1.msra.mxu0 0.0
      %560 = vmatprep.subr.mxu0 0.0
      %561 = vmatpush1.msra.mxu0 0.0
      %562 = vmatprep.subr.mxu0 0.0
      %563 = vmatpush1.msra.mxu0 0.0
      %564 = vmatprep.subr.mxu0 0.0
      %565 = vmatpush1.msra.mxu0 0.0
      %566 = vmatprep.subr.mxu0 0.0
      %567 = vmatpush1.msra.mxu0 0.0
      %568 = vmatprep.subr.mxu0 0.0
      %569 = vmatpush1.msra.mxu0 0.0
      %570 = vmatprep.subr.mxu0 0.0
      %571 = vmatpush1.msra.mxu0 0.0
      %572 = vmatprep.subr.mxu0 0.0
      %573 = vmatpush1.msra.mxu0 0.0
      %574 = vmatprep.subr.mxu0 0.0
      %575 = vmatpush1.msra.mxu0 0.0
      %576 = vmatprep.subr.mxu0 0.0
      %577 = vmatpush1.msra.mxu0 0.0
      %578 = vmatprep.subr.mxu0 0.0
      %579 = vmatpush1.msra.mxu0 0.0
      %580 = vmatprep.subr.mxu0 0.0
      %581 = vmatpush1.msra.mxu0 0.0
      %582 = vmatprep.subr.mxu0 0.0
      %583 = vmatpush1.msra.mxu0 0.0
      %584 = vmatprep.subr.mxu0 0.0
      %585 = vmatpush1.msra.mxu0 0.0
      %586 = vmatprep.subr.mxu0 0.0
      %587 = vmatpush1.msra.mxu0 0.0
      %588 = vmatprep.subr.mxu0 0.0
      %589 = vmatpush1.msra.mxu0 0.0
      %590 = vmatprep.subr.mxu0 0.0
      %591 = vmatpush1.msra.mxu0 0.0
      %592 = vmatprep.mubr.f32.mxu0 0.0
      %593 = vmatmul.mubr.f32.gmra.mrb[0].mxu0 %v526
      %v594 = vpop.f32.mrb[0].mxu0
      %v595 = vadd.f32 0.0, %v594
      %v596 = vpop.f32.mrb[0].mxu0
      %597 = vdwg.mxu0
      %v598 = vadd.f32 %v520, %v595
      %v599 = vxor.u32 %v598, 2147483648
      %v600 = vmul.f32 %v599, 1.442695
      %v601 = vpow.pop %v600
      %v602 = vadd.f32 %v601, 1.0
      %v603 = vrcp.pop %v602
      %v604 = vmul.f32 1.0, %v603
      %v605 = vtanh.pop %v598
      %607 = vrot.lane.b32.xlu0 %v518, 32
      %v608 = vpop.permute.xlu0 %607
      %v610 = vmul.f32 %v604, %v608
      %612 = vrot.lane.b32.xlu0 %v605, 64
      %v613 = vpop.permute.xlu0 %612
      %v615 = vmul.f32 %v604, %v613
      %617 = vrot.lane.b32.xlu0 %v615, 32
      %v618 = vpop.permute.xlu0 %617
      %v620 = vadd.f32 %v610, %v618
      %v621 = vtanh.pop %v620
      %623 = vrot.lane.b32.xlu0 %v621, 64
      %v624 = vpop.permute.xlu0 %623
      %v626 = vmul.f32 %v604, %v624
      %v627 = vld [vmem:[%s0] sm:$0xff]
      %v628 = vstv %s511
      %vm629 = vcmp.lt.s32.totalorder %v628, %v627
      %v630 = vsel %vm629, 1, 0
      %631 = vset.pattern.permute.xlu0 0
      %632 = vperm.xlu0 %631, %v630
      %v633 = vpop.permute.xlu0 %632
      %vm634 = vcmp.eq.s32.totalorder %v633, 1
      %635 = vrot.lane.b32.xlu0 %v517, 96
      %v636 = vpop.permute.xlu0 %635
      %v638 = vsel %vm634, %v626, %v636
      %v639 = vsel %vm634, %v620, %v608
      %641 = vrot.lane.b32.xlu0 %v638, 32
      %v642 = vpop.permute.xlu0 %641
      %644 = vst.msk [vmem:[#allocation4] sm:$0xff] %vm66, %v642
      %646 = vrot.lane.b32.xlu0 %v639, 96
      %v647 = vpop.permute.xlu0 %646
      %649 = vst.msk [vmem:[#allocation5] sm:$0xff] %vm66, %v647
    $region49: #{tpu_custom_call.1} parent=1 // loop_footer
      %s515 = sadd.s32 1, %s511
    $region50: #{tpu_custom_call.1} parent=1 // loop_footer_branch
      %510 = sbr.rel target = $region46
    $region51: #{tpu_custom_call.1} parent=1 // loop_exit
      _
    %v650 = vld [vmem:[#allocation4] sm:$0xff]
    %s651 = scalar_lea.vmem [#allocation9], 8
    %652 = vst.msk [vmem:[%s651] sm:$0xff] %vm66, %v650
    %v653 = vld [vmem:[#allocation5] sm:$0xff]
    %s654 = scalar_lea.vmem [#allocation10], 8
    %655 = vst.msk [vmem:[%s654] sm:$0xff] %vm66, %v653
    // Predicated region
    $region52: #{tpu_custom_call.1} parent=1 // pred_check
      _
    $region53: #{tpu_custom_call.1} parent=1 // pred_check_branch
      %657 = sbr.rel (0) target = $region55
    $region54: #{tpu_custom_call.1} parent=1 // pred_region
      %s659 = ssub.s32 256, 256
      %660 = vsyncadd [#allocation8], %s659
      %s661 = sshll.u32 [#allocation9], 4
      %s662 = int_to_ptr.vmem [resolvable:$true] %s661
      %667 = dma.vmem_to_hbm [thread:$0]  %s662, 256, %s8, [#allocation8], 128, 128, 8
    $region55: #{tpu_custom_call.1} parent=1 // pred_fallthru
      _
    // Predicated region
    $region56: #{tpu_custom_call.1} parent=1 // pred_check
      _
    $region57: #{tpu_custom_call.1} parent=1 // pred_check_branch
      %669 = sbr.rel (0) target = $region59
    $region58: #{tpu_custom_call.1} parent=1 // pred_region
      %s671 = ssub.s32 256, 256
      %672 = vsyncadd [#allocation11], %s671
      %s673 = sshll.u32 [#allocation10], 4
      %s674 = int_to_ptr.vmem [resolvable:$true] %s673
      %679 = dma.vmem_to_hbm [thread:$0]  %s674, 256, %s9, [#allocation11], 128, 128, 8
    $region59: #{tpu_custom_call.1} parent=1 // pred_fallthru
      _
    // Predicated region
    $region60: #{tpu_custom_call.1} parent=1 // pred_check
      _
    $region61: #{tpu_custom_call.1} parent=1 // pred_check_branch
      %681 = sbr.rel (0) target = $region63
    $region62: #{tpu_custom_call.1} parent=1 // pred_region
      %682 = dma.done [#allocation8], 256
    $region63: #{tpu_custom_call.1} parent=1 // pred_fallthru
      _
    // Predicated region
    $region64: #{tpu_custom_call.1} parent=1 // pred_check
      _
    $region65: #{tpu_custom_call.1} parent=1 // pred_check_branch
      %684 = sbr.rel (0) target = $region67
    $region66: #{tpu_custom_call.1} parent=1 // pred_region
      %685 = dma.done [#allocation11], 256
    $region67: #{tpu_custom_call.1} parent=1 // pred_fallthru
      _
    %686 = vsyncpa [#allocation7], 1
    %687 = vsyncpa [#allocation8], 1
    %688 = vsyncpa [#allocation11], 1

</llo_original>
